<compile_context>
chip_gen: v7x
topology: tpu7x:2x2x1
jax: 0.10.0
libtpu: 0.0.40
codegen_flags: <defaults>
</compile_context>

<pallas_src>
import jax
import jax.numpy as jnp
from jax import lax
from jax.experimental import pallas as pl
from jax.experimental.pallas import tpu as pltpu

_H1, _H2 = 20, 15  # hidden sizes fixed by the PyTorch module


def _round_up(x, m):
    return (x + m - 1) // m * m


def _make_kernel(apply_mask):
    """Build the kernel body; `apply_mask` selects the masked/unmasked variant."""

    def kernel(x_ref, w1_ref, b1_ref, w2_ref, b2_ref, w3_ref, b3_ref, *rest):
        if apply_mask:
            mask_ref, y_ref = rest
        else:
            (y_ref,) = rest

        # x.float(); x stays in natural (TB, D_in) layout (contiguous HBM DMA).
        x = x_ref[...].astype(jnp.float32)                       # (TB, D_in)

        # Layer 1: contract D_in of both operands -> (20, TB); batch lands on
        # the 128-lane axis so bias add + tanh are lane-dense.
        h = lax.dot_general(
            w1_ref[...], x,
            dimension_numbers=(((1,), (1,)), ((), ())),
            preferred_element_type=jnp.float32)
        h = jnp.tanh(h + b1_ref[...])                             # (20, TB)

        # Layer 2: (15, 20) @ (20, TB) -> (15, TB), still batch-on-lanes.
        h = jnp.dot(w2_ref[...], h, preferred_element_type=jnp.float32)
        h = jnp.tanh(h + b2_ref[...])                             # (15, TB)

        # Layer 3: contract h axis 0 with w3 axis 1 -> natural (TB, D_out)
        # layout; y is stored without any wrapper-side transpose.
        y = lax.dot_general(
            h, w3_ref[...],
            dimension_numbers=(((0,), (1,)), ((), ())),
            preferred_element_type=jnp.float32)
        y = jnp.tanh(y + b3_ref[...])                             # (TB, D_out)

        if apply_mask:
            # Compare in the mask's native dtype (no f32 round-trip -> no
            # subnormal flush), exactly like PyTorch's `mask == 0`.
            y = jnp.where(mask_ref[...] != 0, y, 0.0)

        y_ref[...] = y

    return kernel


def _choose_tile_b(B, d_in, d_out, x_bytes, mask_bytes, tile_b_cap,
                   vmem_budget_bytes):
    """Batch-tile size derived from a conservative per-row VMEM footprint."""
    lane = 128
    per_row = (
        3 * _round_up(d_in, lane) * max(int(x_bytes), 1)     # x stream (<=3 bufs)
        + 2 * _round_up(d_in, lane) * 4                      # f32 cast / transpose temp
        + (3 * _round_up(d_out, lane) * int(mask_bytes) if mask_bytes else 0)
        + 3 * _round_up(d_out, lane) * 4                     # y buffers + temp
        + (_round_up(_H1, 8) + _round_up(_H2, 8)) * 4        # batch-on-lanes h1/h2
    )
    tb = max(int(vmem_budget_bytes) // per_row, 8)
    tb = min(tb, int(tile_b_cap))
    if B >= 512:
        # Keep >= 2 grid steps so the "parallel" batch axis can shard across
        # both TensorCores on v7x (no-op on single-TC v5e/v6e).
        tb = min(tb, _round_up(pl.cdiv(B, 2), 128))
    if tb >= B:
        return B          # single block; block dim == full array dim is legal
    return max((tb // 8) * 8, 8)


def agentnn_forward(x, params, mask=None, *, tile_b=32768,
                    vmem_budget_bytes=22 * 1024 * 1024):
    """AgentNN forward pass as a single gridded Pallas kernel.

    x:      (B, D_in), any float/int dtype (widened to f32 in-kernel, like
            x.float(); bf16 x keeps its narrow width through the DMA).
    params: dict with PyTorch-orientation weights:
            w1 (20, D_in), b1 (20,), w2 (15, 20), b2 (15,),
            w3 (D_out, 15), b3 (D_out,).
    mask:   optional (B, D_out); entries equal to 0 zero the output.
    Returns (B, D_out) float32.
    """
    B, d_in = x.shape
    d_out = params["w3"].shape[0]

    apply_mask = mask is not None
    m = None
    mask_bytes = 0
    if apply_mask:
        m = mask
        if m.dtype == jnp.bool_:
            # 1-byte HBM stream, compared in-kernel (keeps the lowering robust
            # vs. feeding bool refs directly); exact for boolean masks.
            m = m.astype(jnp.int8)
        mask_bytes = m.dtype.itemsize

    tb = _choose_tile_b(B, d_in, d_out, x.dtype.itemsize, mask_bytes,
                        tile_b, vmem_budget_bytes)
    num_steps = pl.cdiv(B, tb)
    grid = (num_steps,)

    # Deeper buffering on the streamed inputs once the grid is long enough for
    # it to matter (hides the input DMA ramp at step boundaries).
    stream_mode = pl.Buffered(3) if num_steps >= 3 else None

    def stream_spec(block):
        if stream_mode is not None:
            return pl.BlockSpec(block, lambda i: (i, 0),
                                pipeline_mode=stream_mode)
        return pl.BlockSpec(block, lambda i: (i, 0))

    def resident(shape):      # same block every step -> DMA'd once, VMEM-resident
        return pl.BlockSpec(shape, lambda i: (0, 0))

    # Biases: columns for the batch-on-lanes intermediates, row for natural y.
    b1 = params["b1"].reshape(_H1, 1)
    b2 = params["b2"].reshape(_H2, 1)
    b3 = params["b3"].reshape(1, d_out)

    in_specs = [
        stream_spec((tb, d_in)),
        resident(params["w1"].shape), resident((_H1, 1)),
        resident(params["w2"].shape), resident((_H2, 1)),
        resident(params["w3"].shape), resident((1, d_out)),
    ]
    inputs = [x, params["w1"], b1, params["w2"], b2, params["w3"], b3]

    if apply_mask:
        in_specs.append(stream_spec((tb, d_out)))
        inputs.append(m)

    # Advisory cost hint — matches the actual streamed bytes (natural layouts,
    # no padding / transpose passes).
    flops = 2 * B * (d_in * _H1 + _H1 * _H2 + _H2 * d_out)
    transcendentals = B * (_H1 + _H2 + d_out)
    bytes_accessed = (
        B * d_in * x.dtype.itemsize
        + B * d_out * 4
        + (B * d_out * mask_bytes if apply_mask else 0)
        + sum(int(p.size) * p.dtype.itemsize for p in params.values())
    )

    y = pl.pallas_call(
        _make_kernel(apply_mask),
        out_shape=jax.ShapeDtypeStruct((B, d_out), jnp.float32),
        grid=grid,
        in_specs=in_specs,
        out_specs=pl.BlockSpec((tb, d_out), lambda i: (i, 0)),
        compiler_params=pltpu.CompilerParams(
            dimension_semantics=("parallel",),       # megacore sharding on v7x
            vmem_limit_bytes=32 * 1024 * 1024),      # <= physical on v5e/v6e/v7x
        cost_estimate=pl.CostEstimate(
            flops=flops,
            transcendentals=transcendentals,
            bytes_accessed=bytes_accessed),
    )(*inputs)

    return y


def init_agentnn_params(key, d_in, d_out):
    """Deterministic init matching AgentNN (PyTorch (out, in) weight layout)."""
    keys = jax.random.split(key, 6)

    def linear(kw, kb, fan_in, fan_out):
        bound = 1.0 / jnp.sqrt(jnp.float32(fan_in))
        w = jax.random.uniform(kw, (fan_out, fan_in), jnp.float32, -bound, bound)
        b = jax.random.uniform(kb, (fan_out,), jnp.float32, -bound, bound)
        return w, b

    w1, b1 = linear(keys[0], keys[1], d_in, _H1)
    w2, b2 = linear(keys[2], keys[3], _H1, _H2)
    w3, b3 = linear(keys[4], keys[5], _H2, d_out)
    return {"w1": w1, "b1": b1, "w2": w2, "b2": b2, "w3": w3, "b3": b3}


def agentnn_reference(x, params, mask=None):
    """Pure-JAX reference for correctness checking."""
    h = jnp.tanh(x.astype(jnp.float32) @ params["w1"].T + params["b1"])
    h = jnp.tanh(h @ params["w2"].T + params["b2"])
    y = jnp.tanh(h @ params["w3"].T + params["b3"])
    if mask is not None:
        y = jnp.where(mask == 0, 0.0, y)
    return y


if __name__ == "__main__":
    key = jax.random.PRNGKey(0)
    k_params, k_x, k_mask, k_x2, k_mask2 = jax.random.split(key, 5)

    # Small shapes consistent with the module.
    B, D_IN, D_OUT = 8, 32, 8
    params = init_agentnn_params(k_params, D_IN, D_OUT)
    x = jax.random.normal(k_x, (B, D_IN), dtype=jnp.float32)
    mask = jax.random.uniform(k_mask, (B, D_OUT)) > 0.3        # bool mask

    y_masked = jax.block_until_ready(agentnn_forward(x, params, mask))
    y_nomask = jax.block_until_ready(agentnn_forward(x, params))

    assert y_masked.shape == (B, D_OUT)
    assert jnp.allclose(y_masked, agentnn_reference(x, params, mask),
                        atol=1e-5, rtol=1e-5), "masked mismatch"
    assert jnp.allclose(y_nomask, agentnn_reference(x, params),
                        atol=1e-5, rtol=1e-5), "unmasked mismatch"

    # Multi-step grid with a partial last block (exercises the Buffered(3)
    # streamed-input path and the no-padding boundary handling).
    B2 = 300
    x2 = jax.random.normal(k_x2, (B2, D_IN), dtype=jnp.float32)
    mask2 = jax.random.uniform(k_mask2, (B2, D_OUT)) > 0.3
    y2 = jax.block_until_ready(agentnn_forward(x2, params, mask2, tile_b=128))
    assert y2.shape == (B2, D_OUT)
    assert jnp.allclose(y2, agentnn_reference(x2, params, mask2),
                        atol=1e-5, rtol=1e-5), "tiled mismatch"

    print("KERNEL_OK")
</pallas_src>

<mosaic_0001>
module attributes {stable_mosaic.version = 11 : i64} {
  func.func @kernel(%arg0: i32, %arg1: memref<8x32xf32, #tpu.memory_space<vmem>>, %arg2: memref<20x32xf32, #tpu.memory_space<vmem>>, %arg3: memref<20x1xf32, #tpu.memory_space<vmem>>, %arg4: memref<15x20xf32, #tpu.memory_space<vmem>>, %arg5: memref<15x1xf32, #tpu.memory_space<vmem>>, %arg6: memref<8x15xf32, #tpu.memory_space<vmem>>, %arg7: memref<1x8xf32, #tpu.memory_space<vmem>>, %arg8: memref<8x8xi8, #tpu.memory_space<vmem>>, %arg9: memref<8x8xf32, #tpu.memory_space<vmem>>) attributes {dimension_semantics = [#tpu.dimension_semantics<parallel>], iteration_bounds = array<i64: 1>, scalar_prefetch = 0 : i64, scratch_operands = 0 : i64, tpu.core_type = #tpu.core_type<tc>, window_params = [{transform_indices = @transform_0, window_bounds = array<i64: 8, 32>}, {pipeline_mode = #tpu.pipeline_mode<synchronous>, transform_indices = @transform_1, window_bounds = array<i64: 20, 32>}, {pipeline_mode = #tpu.pipeline_mode<synchronous>, transform_indices = @transform_2, window_bounds = array<i64: 20, 1>}, {pipeline_mode = #tpu.pipeline_mode<synchronous>, transform_indices = @transform_3, window_bounds = array<i64: 15, 20>}, {pipeline_mode = #tpu.pipeline_mode<synchronous>, transform_indices = @transform_4, window_bounds = array<i64: 15, 1>}, {pipeline_mode = #tpu.pipeline_mode<synchronous>, transform_indices = @transform_5, window_bounds = array<i64: 8, 15>}, {pipeline_mode = #tpu.pipeline_mode<synchronous>, transform_indices = @transform_6, window_bounds = array<i64: 1, 8>}, {transform_indices = @transform_7, window_bounds = array<i64: 8, 8>}, {transform_indices = @transform_8, window_bounds = array<i64: 8, 8>}]} {
    %c0 = arith.constant 0 : index
    %c0_0 = arith.constant 0 : index
    %0 = vector.load %arg1[%c0, %c0_0] : memref<8x32xf32, #tpu.memory_space<vmem>>, vector<8x32xf32>
    %c0_1 = arith.constant 0 : index
    %c0_2 = arith.constant 0 : index
    %1 = vector.load %arg2[%c0_1, %c0_2] : memref<20x32xf32, #tpu.memory_space<vmem>>, vector<20x32xf32>
    %cst = arith.constant dense<0.000000e+00> : vector<20x8xf32>
    %2 = tpu.matmul %1, %0, %cst {dimension_numbers = #tpu.dot_dimension_numbers<[1], [1], [0], [0], [0, 0, 1, 0], [], []>} : vector<20x32xf32>, vector<8x32xf32>, vector<20x8xf32> -> vector<20x8xf32>
    %c0_3 = arith.constant 0 : index
    %c0_4 = arith.constant 0 : index
    %3 = vector.load %arg3[%c0_3, %c0_4] : memref<20x1xf32, #tpu.memory_space<vmem>>, vector<20x1xf32>
    %4 = vector.broadcast %3 : vector<20x1xf32> to vector<20x8xf32>
    %5 = arith.addf %2, %4 : vector<20x8xf32>
    %6 = math.tanh %5 : vector<20x8xf32>
    %c0_5 = arith.constant 0 : index
    %c0_6 = arith.constant 0 : index
    %7 = vector.load %arg4[%c0_5, %c0_6] : memref<15x20xf32, #tpu.memory_space<vmem>>, vector<15x20xf32>
    %cst_7 = arith.constant dense<0.000000e+00> : vector<15x8xf32>
    %8 = tpu.matmul %7, %6, %cst_7 {dimension_numbers = #tpu.dot_dimension_numbers<[1], [0], [0], [1], [0, 0, 1, 1], [], []>} : vector<15x20xf32>, vector<20x8xf32>, vector<15x8xf32> -> vector<15x8xf32>
    %c0_8 = arith.constant 0 : index
    %c0_9 = arith.constant 0 : index
    %9 = vector.load %arg5[%c0_8, %c0_9] : memref<15x1xf32, #tpu.memory_space<vmem>>, vector<15x1xf32>
    %10 = vector.broadcast %9 : vector<15x1xf32> to vector<15x8xf32>
    %11 = arith.addf %8, %10 : vector<15x8xf32>
    %12 = math.tanh %11 : vector<15x8xf32>
    %c0_10 = arith.constant 0 : index
    %c0_11 = arith.constant 0 : index
    %13 = vector.load %arg6[%c0_10, %c0_11] : memref<8x15xf32, #tpu.memory_space<vmem>>, vector<8x15xf32>
    %cst_12 = arith.constant dense<0.000000e+00> : vector<8x8xf32>
    %14 = tpu.matmul %12, %13, %cst_12 {dimension_numbers = #tpu.dot_dimension_numbers<[0], [1], [1], [0], [0, 1, 1, 0], [], []>} : vector<15x8xf32>, vector<8x15xf32>, vector<8x8xf32> -> vector<8x8xf32>
    %c0_13 = arith.constant 0 : index
    %c0_14 = arith.constant 0 : index
    %15 = vector.load %arg7[%c0_13, %c0_14] : memref<1x8xf32, #tpu.memory_space<vmem>>, vector<1x8xf32>
    %16 = vector.broadcast %15 : vector<1x8xf32> to vector<8x8xf32>
    %17 = arith.addf %14, %16 : vector<8x8xf32>
    %18 = math.tanh %17 : vector<8x8xf32>
    %c0_15 = arith.constant 0 : index
    %c0_16 = arith.constant 0 : index
    %19 = vector.load %arg8[%c0_15, %c0_16] : memref<8x8xi8, #tpu.memory_space<vmem>>, vector<8x8xi8>
    %c0_i8 = arith.constant 0 : i8
    %20 = vector.broadcast %c0_i8 : i8 to vector<8x8xi8>
    %21 = arith.cmpi ne, %19, %20 : vector<8x8xi8>
    %cst_17 = arith.constant 0.000000e+00 : f32
    %22 = vector.broadcast %cst_17 : f32 to vector<8x8xf32>
    %23 = arith.select %21, %18, %22 : vector<8x8xi1>, vector<8x8xf32>
    %c0_18 = arith.constant 0 : index
    %c0_19 = arith.constant 0 : index
    %24 = vector.load %arg9[%c0_18, %c0_19] : memref<8x8xf32, #tpu.memory_space<vmem>>, vector<8x8xf32>
    tpu.vector_store %arg9[%c0_18, %c0_19], %23 {strides = array<i32>} : memref<8x8xf32, #tpu.memory_space<vmem>>, vector<8x8xf32>,
    return
  }
  func.func @transform_0(%arg0: i32) -> (i32, i32) {
    %c0_i32 = arith.constant 0 : i32
    %c0_i32_0 = arith.constant 0 : i32
    return %arg0, %c0_i32 : i32, i32
  }
  func.func @transform_1(%arg0: i32) -> (i32, i32) {
    %c0_i32 = arith.constant 0 : i32
    %c0_i32_0 = arith.constant 0 : i32
    %c0_i32_1 = arith.constant 0 : i32
    return %c0_i32, %c0_i32_0 : i32, i32
  }
  func.func @transform_2(%arg0: i32) -> (i32, i32) {
    %c0_i32 = arith.constant 0 : i32
    %c0_i32_0 = arith.constant 0 : i32
    %c0_i32_1 = arith.constant 0 : i32
    return %c0_i32, %c0_i32_0 : i32, i32
  }
  func.func @transform_3(%arg0: i32) -> (i32, i32) {
    %c0_i32 = arith.constant 0 : i32
    %c0_i32_0 = arith.constant 0 : i32
    %c0_i32_1 = arith.constant 0 : i32
    return %c0_i32, %c0_i32_0 : i32, i32
  }
  func.func @transform_4(%arg0: i32) -> (i32, i32) {
    %c0_i32 = arith.constant 0 : i32
    %c0_i32_0 = arith.constant 0 : i32
    %c0_i32_1 = arith.constant 0 : i32
    return %c0_i32, %c0_i32_0 : i32, i32
  }
  func.func @transform_5(%arg0: i32) -> (i32, i32) {
    %c0_i32 = arith.constant 0 : i32
    %c0_i32_0 = arith.constant 0 : i32
    %c0_i32_1 = arith.constant 0 : i32
    return %c0_i32, %c0_i32_0 : i32, i32
  }
  func.func @transform_6(%arg0: i32) -> (i32, i32) {
    %c0_i32 = arith.constant 0 : i32
    %c0_i32_0 = arith.constant 0 : i32
    %c0_i32_1 = arith.constant 0 : i32
    return %c0_i32, %c0_i32_0 : i32, i32
  }
  func.func @transform_7(%arg0: i32) -> (i32, i32) {
    %c0_i32 = arith.constant 0 : i32
    %c0_i32_0 = arith.constant 0 : i32
    return %arg0, %c0_i32 : i32, i32
  }
  func.func @transform_8(%arg0: i32) -> (i32, i32) {
    %c0_i32 = arith.constant 0 : i32
    %c0_i32_0 = arith.constant 0 : i32
    return %arg0, %c0_i32 : i32, i32
  }
}

</mosaic_0001>

<llo_original>
// kernel: tpu_custom_call.1
$region0: #{tpu_custom_call.1}
  #allocation0 [shape = 'u32[]', space=smem, size = 0x4, offset = 0x4, fixed_abs, tag = 'smem constant byte address 0x4 - core index']
  #allocation1 [shape = 'u32[144,128]{1,0:T(1,128)}', space=vmem, size = 0x12000, scoped, tag = 'internal scratch']
  %s0 = inlined_call_operand.hbm [shape: f32[8,32], index: 0, kind: input, shape index: {}]
  %s1 = inlined_call_operand.vmem [shape: f32[20,32], index: 1, kind: input, shape index: {}]
  %s2 = inlined_call_operand.vmem [shape: f32[20,1], index: 2, kind: input, shape index: {}]
  %s3 = inlined_call_operand.vmem [shape: f32[15,20], index: 3, kind: input, shape index: {}]
  %s4 = inlined_call_operand.vmem [shape: f32[15,1], index: 4, kind: input, shape index: {}]
  %s5 = inlined_call_operand.vmem [shape: f32[8,15], index: 5, kind: input, shape index: {}]
  %s6 = inlined_call_operand.vmem [shape: f32[1,8], index: 6, kind: input, shape index: {}]
  %s7 = inlined_call_operand.vmem [shape: s8[8,8], index: 7, kind: input, shape index: {}]
  %s8 = inlined_call_operand.hbm [shape: f32[8,8], index: 8, kind: output, shape index: {}]
  %s9 = sld [smem:[#allocation0]]
  $region46: #{tpu_custom_call.1} parent=0
    _
  %s11 = ssub.s32 1, %s9
  %s12 = scalar_select 0, %s11, %s9
  $region1: #{tpu_custom_call.1} parent=0
    #allocation2 [shape = 'u8[4096]{0}', space=vmem, size = 0x1000, scoped, tag = 'input window, operand 0, single buffered']
    #allocation3 [shape = 's32[1]{0}', space=sflag, size = 0x4, scoped, tag = 'scoped memory for tpu_custom_call.1']
    #allocation4 [shape = 's32[1]{0}', space=sflag, size = 0x4, scoped, tag = 'scoped memory for tpu_custom_call.1']
    #allocation5 [shape = 'u8[4096]{0}', space=vmem, size = 0x1000, scoped, tag = 'output window, operand 0, single buffered']
    %13 = vsyncpa [#allocation3], 0
    %14 = vsyncpa [#allocation4], 0
    // Predicated region
    $region2: #{tpu_custom_call.1} parent=1 // pred_check
      _
    $region3: #{tpu_custom_call.1} parent=1 // pred_check_branch
      %16 = sbr.rel (0) target = $region5
    $region4: #{tpu_custom_call.1} parent=1 // pred_region
      %s18 = ssub.s32 128, 128
      %19 = vsyncadd [#allocation3], %s18
      %s21 = sshll.u32 [#allocation2], 4
      %s22 = int_to_ptr.vmem [resolvable:$true] %s21
      %24 = dma.hbm_to_vmem [thread:$0]  %s0, 128, %s22, [#allocation3]
    $region5: #{tpu_custom_call.1} parent=1 // pred_fallthru
      _
    // Predicated region
    $region6: #{tpu_custom_call.1} parent=1 // pred_check
      _
    $region7: #{tpu_custom_call.1} parent=1 // pred_check_branch
      %26 = sbr.rel (0) target = $region9
    $region8: #{tpu_custom_call.1} parent=1 // pred_region
      _
    $region9: #{tpu_custom_call.1} parent=1 // pred_fallthru
      _
    // Predicated region
    $region10: #{tpu_custom_call.1} parent=1 // pred_check
      _
    $region11: #{tpu_custom_call.1} parent=1 // pred_check_branch
      %28 = sbr.rel (0) target = $region13
    $region12: #{tpu_custom_call.1} parent=1 // pred_region
      _
    $region13: #{tpu_custom_call.1} parent=1 // pred_fallthru
      _
    // Predicated region
    $region14: #{tpu_custom_call.1} parent=1 // pred_check
      _
    $region15: #{tpu_custom_call.1} parent=1 // pred_check_branch
      %30 = sbr.rel (0) target = $region17
    $region16: #{tpu_custom_call.1} parent=1 // pred_region
      _
    $region17: #{tpu_custom_call.1} parent=1 // pred_fallthru
      _
    // Predicated region
    $region18: #{tpu_custom_call.1} parent=1 // pred_check
      _
    $region19: #{tpu_custom_call.1} parent=1 // pred_check_branch
      %32 = sbr.rel (0) target = $region21
    $region20: #{tpu_custom_call.1} parent=1 // pred_region
      _
    $region21: #{tpu_custom_call.1} parent=1 // pred_fallthru
      _
    // Predicated region
    $region22: #{tpu_custom_call.1} parent=1 // pred_check
      _
    $region23: #{tpu_custom_call.1} parent=1 // pred_check_branch
      %34 = sbr.rel (0) target = $region25
    $region24: #{tpu_custom_call.1} parent=1 // pred_region
      _
    $region25: #{tpu_custom_call.1} parent=1 // pred_fallthru
      _
    // Predicated region
    $region26: #{tpu_custom_call.1} parent=1 // pred_check
      _
    $region27: #{tpu_custom_call.1} parent=1 // pred_check_branch
      %36 = sbr.rel (0) target = $region29
    $region28: #{tpu_custom_call.1} parent=1 // pred_region
      _
    $region29: #{tpu_custom_call.1} parent=1 // pred_fallthru
      _
    // Predicated region
    $region30: #{tpu_custom_call.1} parent=1 // pred_check
      _
    $region31: #{tpu_custom_call.1} parent=1 // pred_check_branch
      %38 = sbr.rel (0) target = $region33
    $region32: #{tpu_custom_call.1} parent=1 // pred_region
      _
    $region33: #{tpu_custom_call.1} parent=1 // pred_fallthru
      _
    // Predicated region
    $region34: #{tpu_custom_call.1} parent=1 // pred_check
      _
    $region35: #{tpu_custom_call.1} parent=1 // pred_check_branch
      %40 = sbr.rel (0) target = $region37
    $region36: #{tpu_custom_call.1} parent=1 // pred_region
      %41 = dma.done [#allocation3], 128
    $region37: #{tpu_custom_call.1} parent=1 // pred_fallthru
      _
    %v44 = vld [vmem:[#allocation2] sm:$0xff]
    %v45 = vld [vmem:[%s1] sm:$0xff]
    %v46 = vld [vmem:[%s1 + $0x8] sm:$0xff]
    %v47 = vld [vmem:[%s1 + $0x10] sm:$0xf]
    %v48 = vld [vmem:[%s2] sm:$0xff]
    %v49 = vld [vmem:[%s2 + $0x8] sm:$0xff]
    %v50 = vld [vmem:[%s2 + $0x10] sm:$0xf]
    %52 = vset.pattern.permute.xlu0 0
    %53 = vperm.xlu0 %52, %v48
    %v54 = vpop.permute.xlu0 %53
    %57 = vset.pattern.permute.xlu0 0
    %58 = vperm.xlu0 %57, %v49
    %v59 = vpop.permute.xlu0 %58
    %62 = vset.pattern.permute.xlu0 0
    %63 = vperm.xlu0 %62, %v50
    %v64 = vpop.permute.xlu0 %63
    %vm66 = vcmask 261120
    %v68 = vsel %vm66, %v45, 0
    %v71 = vsel %vm66, %v46, 0
    %v74 = vsel %vm66, %v47, 0
    %v77 = vsel %vm66, %v44, 0
    %79 = vmatprep.subr.mxu0 0.0
    %80 = vmatpush1.xpose.msra.mxu0 %v77
    %81 = vmatprep.subr.mxu0 0.0
    %82 = vmatpush1.xpose.msra.mxu0 0.0
    %83 = vmatprep.subr.mxu0 0.0
    %84 = vmatpush1.xpose.msra.mxu0 0.0
    %85 = vmatprep.subr.mxu0 0.0
    %86 = vmatpush1.xpose.msra.mxu0 0.0
    %87 = vmatprep.subr.mxu0 0.0
    %88 = vmatpush1.xpose.msra.mxu0 0.0
    %89 = vmatprep.subr.mxu0 0.0
    %90 = vmatpush1.xpose.msra.mxu0 0.0
    %91 = vmatprep.subr.mxu0 0.0
    %92 = vmatpush1.xpose.msra.mxu0 0.0
    %93 = vmatprep.subr.mxu0 0.0
    %94 = vmatpush1.xpose.msra.mxu0 0.0
    %95 = vmatprep.subr.mxu0 0.0
    %96 = vmatpush1.xpose.msra.mxu0 0.0
    %97 = vmatprep.subr.mxu0 0.0
    %98 = vmatpush1.xpose.msra.mxu0 0.0
    %99 = vmatprep.subr.mxu0 0.0
    %100 = vmatpush1.xpose.msra.mxu0 0.0
    %101 = vmatprep.subr.mxu0 0.0
    %102 = vmatpush1.xpose.msra.mxu0 0.0
    %103 = vmatprep.subr.mxu0 0.0
    %104 = vmatpush1.xpose.msra.mxu0 0.0
    %105 = vmatprep.subr.mxu0 0.0
    %106 = vmatpush1.xpose.msra.mxu0 0.0
    %107 = vmatprep.subr.mxu0 0.0
    %108 = vmatpush1.xpose.msra.mxu0 0.0
    %109 = vmatprep.subr.mxu0 0.0
    %110 = vmatpush1.xpose.msra.mxu0 0.0
    %111 = vmatprep.subr.mxu0 0.0
    %112 = vmatpush1.xpose.msra.mxu0 0.0
    %113 = vmatprep.subr.mxu0 0.0
    %114 = vmatpush1.xpose.msra.mxu0 0.0
    %115 = vmatprep.subr.mxu0 0.0
    %116 = vmatpush1.xpose.msra.mxu0 0.0
    %117 = vmatprep.subr.mxu0 0.0
    %118 = vmatpush1.xpose.msra.mxu0 0.0
    %119 = vmatprep.subr.mxu0 0.0
    %120 = vmatpush1.xpose.msra.mxu0 0.0
    %121 = vmatprep.subr.mxu0 0.0
    %122 = vmatpush1.xpose.msra.mxu0 0.0
    %123 = vmatprep.subr.mxu0 0.0
    %124 = vmatpush1.xpose.msra.mxu0 0.0
    %125 = vmatprep.subr.mxu0 0.0
    %126 = vmatpush1.xpose.msra.mxu0 0.0
    %127 = vmatprep.subr.mxu0 0.0
    %128 = vmatpush1.xpose.msra.mxu0 0.0
    %129 = vmatprep.subr.mxu0 0.0
    %130 = vmatpush1.xpose.msra.mxu0 0.0
    %131 = vmatprep.subr.mxu0 0.0
    %132 = vmatpush1.xpose.msra.mxu0 0.0
    %133 = vmatprep.subr.mxu0 0.0
    %134 = vmatpush1.xpose.msra.mxu0 0.0
    %135 = vmatprep.subr.mxu0 0.0
    %136 = vmatpush1.xpose.msra.mxu0 0.0
    %137 = vmatprep.subr.mxu0 0.0
    %138 = vmatpush1.xpose.msra.mxu0 0.0
    %139 = vmatprep.subr.mxu0 0.0
    %140 = vmatpush1.xpose.msra.mxu0 0.0
    %141 = vmatprep.subr.mxu0 0.0
    %142 = vmatpush1.xpose.msra.mxu0 0.0
    %143 = vmatprep.mubr.f32.mxu0 0.0
    %144 = vmatmul.mubr.f32.gmra.mrb[0].mxu0 %v68
    %v145 = vpop.f32.mrb[0].mxu0
    %v146 = vadd.f32 %v54, %v145
    %v147 = vpop.f32.mrb[0].mxu0
    %148 = vmatprep.mubr.f32.mxu0 0.0
    %149 = vmatmul.mubr.f32.gmra.mrb[0].mxu0 %v71
    %v150 = vpop.f32.mrb[0].mxu0
    %v151 = vadd.f32 %v59, %v150
    %v152 = vpop.f32.mrb[0].mxu0
    %153 = vmatprep.mubr.f32.mxu0 0.0
    %154 = vmatmul.mubr.f32.gmra.mrb[0].mxu0 %v74
    %v155 = vpop.f32.mrb[0].mxu0
    %v156 = vadd.f32 %v64, %v155
    %v157 = vpop.f32.mrb[0].mxu0
    %158 = vdwg.mxu0
    %v159 = vtanh.pop %v146
    %v160 = vtanh.pop %v151
    %v161 = vtanh.pop %v156
    %v162 = vld [vmem:[%s3] sm:$0xff]
    %v163 = vld [vmem:[%s3 + $0x8] sm:$0x7f]
    %v164 = vld [vmem:[%s4] sm:$0xff]
    %v165 = vld [vmem:[%s4 + $0x8] sm:$0x7f]
    %167 = vset.pattern.permute.xlu0 0
    %168 = vperm.xlu0 %167, %v164
    %v169 = vpop.permute.xlu0 %168
    %172 = vset.pattern.permute.xlu0 0
    %173 = vperm.xlu0 %172, %v165
    %v174 = vpop.permute.xlu0 %173
    %vm176 = vcmask 162816
    %v178 = vsel %vm176, %v162, 0
    %v181 = vsel %vm176, %v163, 0
    %vm183 = vcmask 1043456
    %v185 = vsel %vm183, %v161, 0
    %187 = vmatprep.subr.mxu0 0.0
    %188 = vmatpush1.msra.mxu0 %v159
    %189 = vmatprep.subr.mxu0 0.0
    %190 = vmatpush1.msra.mxu0 %v160
    %191 = vmatprep.subr.mxu0 0.0
    %192 = vmatpush1.msra.mxu0 %v185
    %193 = vmatprep.subr.mxu0 0.0
    %194 = vmatpush1.msra.mxu0 0.0
    %195 = vmatprep.subr.mxu0 0.0
    %196 = vmatpush1.msra.mxu0 0.0
    %197 = vmatprep.subr.mxu0 0.0
    %198 = vmatpush1.msra.mxu0 0.0
    %199 = vmatprep.subr.mxu0 0.0
    %200 = vmatpush1.msra.mxu0 0.0
    %201 = vmatprep.subr.mxu0 0.0
    %202 = vmatpush1.msra.mxu0 0.0
    %203 = vmatprep.subr.mxu0 0.0
    %204 = vmatpush1.msra.mxu0 0.0
    %205 = vmatprep.subr.mxu0 0.0
    %206 = vmatpush1.msra.mxu0 0.0
    %207 = vmatprep.subr.mxu0 0.0
    %208 = vmatpush1.msra.mxu0 0.0
    %209 = vmatprep.subr.mxu0 0.0
    %210 = vmatpush1.msra.mxu0 0.0
    %211 = vmatprep.subr.mxu0 0.0
    %212 = vmatpush1.msra.mxu0 0.0
    %213 = vmatprep.subr.mxu0 0.0
    %214 = vmatpush1.msra.mxu0 0.0
    %215 = vmatprep.subr.mxu0 0.0
    %216 = vmatpush1.msra.mxu0 0.0
    %217 = vmatprep.subr.mxu0 0.0
    %218 = vmatpush1.msra.mxu0 0.0
    %219 = vmatprep.subr.mxu0 0.0
    %220 = vmatpush1.msra.mxu0 0.0
    %221 = vmatprep.subr.mxu0 0.0
    %222 = vmatpush1.msra.mxu0 0.0
    %223 = vmatprep.subr.mxu0 0.0
    %224 = vmatpush1.msra.mxu0 0.0
    %225 = vmatprep.subr.mxu0 0.0
    %226 = vmatpush1.msra.mxu0 0.0
    %227 = vmatprep.subr.mxu0 0.0
    %228 = vmatpush1.msra.mxu0 0.0
    %229 = vmatprep.subr.mxu0 0.0
    %230 = vmatpush1.msra.mxu0 0.0
    %231 = vmatprep.subr.mxu0 0.0
    %232 = vmatpush1.msra.mxu0 0.0
    %233 = vmatprep.subr.mxu0 0.0
    %234 = vmatpush1.msra.mxu0 0.0
    %235 = vmatprep.subr.mxu0 0.0
    %236 = vmatpush1.msra.mxu0 0.0
    %237 = vmatprep.subr.mxu0 0.0
    %238 = vmatpush1.msra.mxu0 0.0
    %239 = vmatprep.subr.mxu0 0.0
    %240 = vmatpush1.msra.mxu0 0.0
    %241 = vmatprep.subr.mxu0 0.0
    %242 = vmatpush1.msra.mxu0 0.0
    %243 = vmatprep.subr.mxu0 0.0
    %244 = vmatpush1.msra.mxu0 0.0
    %245 = vmatprep.subr.mxu0 0.0
    %246 = vmatpush1.msra.mxu0 0.0
    %247 = vmatprep.subr.mxu0 0.0
    %248 = vmatpush1.msra.mxu0 0.0
    %249 = vmatprep.subr.mxu0 0.0
    %250 = vmatpush1.msra.mxu0 0.0
    %251 = vmatprep.mubr.f32.mxu0 0.0
    %252 = vmatmul.mubr.f32.gmra.mrb[0].mxu0 %v178
    %v253 = vpop.f32.mrb[0].mxu0
    %v254 = vadd.f32 %v169, %v253
    %v255 = vpop.f32.mrb[0].mxu0
    %256 = vmatprep.mubr.f32.mxu0 0.0
    %257 = vmatmul.mubr.f32.gmra.mrb[0].mxu0 %v181
    %v258 = vpop.f32.mrb[0].mxu0
    %v259 = vadd.f32 %v174, %v258
    %v260 = vpop.f32.mrb[0].mxu0
    %261 = vdwg.mxu0
    %v262 = vtanh.pop %v254
    %v263 = vtanh.pop %v259
    %v264 = vld [vmem:[%s5] sm:$0xff]
    %v265 = vld [vmem:[%s6] sm:$0x1]
    %v267 = vlaneseq
    %v268 = vshrl.u32 %v267, 7
    %v269 = vsub.s32 0, %v268
    %v270 = vrot.slane %v265, %v269
    %272 = vxpose.xlu0.b32.start [1/16] %v262, 128
    %273 = vxpose.xlu0.b32.cont [2/16] %v263, 128
    %274 = vxpose.xlu0.b32.cont [3/16] 0.0, 128
    %275 = vxpose.xlu0.b32.cont [4/16] 0.0, 128
    %276 = vxpose.xlu0.b32.cont [5/16] 0.0, 128
    %277 = vxpose.xlu0.b32.cont [6/16] 0.0, 128
    %278 = vxpose.xlu0.b32.cont [7/16] 0.0, 128
    %279 = vxpose.xlu0.b32.cont [8/16] 0.0, 128
    %280 = vxpose.xlu0.b32.cont [9/16] 0.0, 128
    %281 = vxpose.xlu0.b32.cont [10/16] 0.0, 128
    %282 = vxpose.xlu0.b32.cont [11/16] 0.0, 128
    %283 = vxpose.xlu0.b32.cont [12/16] 0.0, 128
    %284 = vxpose.xlu0.b32.cont [13/16] 0.0, 128
    %285 = vxpose.xlu0.b32.cont [14/16] 0.0, 128
    %286 = vxpose.xlu0.b32.cont [15/16] 0.0, 128
    %287 = vxpose.xlu0.b32.end [16/16] 0.0, 128
    %v288 = vpop.trf.xlu0
    %v289 = vpop.trf.xlu0
    %v290 = vpop.trf.xlu0
    %v291 = vpop.trf.xlu0
    %v292 = vpop.trf.xlu0
    %v293 = vpop.trf.xlu0
    %v294 = vpop.trf.xlu0
    %v295 = vpop.trf.xlu0
    %v296 = vpop.trf.xlu0
    %v297 = vpop.trf.xlu0
    %v298 = vpop.trf.xlu0
    %v299 = vpop.trf.xlu0
    %v300 = vpop.trf.xlu0
    %v301 = vpop.trf.xlu0
    %v302 = vpop.trf.xlu0
    %v303 = vpop.trf.xlu0
    %vm304 = vcmask 121856
    %v306 = vsel %vm304, %v288, 0
    %v309 = vsel %vm304, %v264, 0
    %311 = vmatprep.subr.mxu0 0.0
    %312 = vmatpush1.xpose.msra.mxu0 %v309
    %313 = vmatprep.subr.mxu0 0.0
    %314 = vmatpush1.xpose.msra.mxu0 0.0
    %315 = vmatprep.subr.mxu0 0.0
    %316 = vmatpush1.xpose.msra.mxu0 0.0
    %317 = vmatprep.subr.mxu0 0.0
    %318 = vmatpush1.xpose.msra.mxu0 0.0
    %319 = vmatprep.subr.mxu0 0.0
    %320 = vmatpush1.xpose.msra.mxu0 0.0
    %321 = vmatprep.subr.mxu0 0.0
    %322 = vmatpush1.xpose.msra.mxu0 0.0
    %323 = vmatprep.subr.mxu0 0.0
    %324 = vmatpush1.xpose.msra.mxu0 0.0
    %325 = vmatprep.subr.mxu0 0.0
    %326 = vmatpush1.xpose.msra.mxu0 0.0
    %327 = vmatprep.subr.mxu0 0.0
    %328 = vmatpush1.xpose.msra.mxu0 0.0
    %329 = vmatprep.subr.mxu0 0.0
    %330 = vmatpush1.xpose.msra.mxu0 0.0
    %331 = vmatprep.subr.mxu0 0.0
    %332 = vmatpush1.xpose.msra.mxu0 0.0
    %333 = vmatprep.subr.mxu0 0.0
    %334 = vmatpush1.xpose.msra.mxu0 0.0
    %335 = vmatprep.subr.mxu0 0.0
    %336 = vmatpush1.xpose.msra.mxu0 0.0
    %337 = vmatprep.subr.mxu0 0.0
    %338 = vmatpush1.xpose.msra.mxu0 0.0
    %339 = vmatprep.subr.mxu0 0.0
    %340 = vmatpush1.xpose.msra.mxu0 0.0
    %341 = vmatprep.subr.mxu0 0.0
    %342 = vmatpush1.xpose.msra.mxu0 0.0
    %343 = vmatprep.subr.mxu0 0.0
    %344 = vmatpush1.xpose.msra.mxu0 0.0
    %345 = vmatprep.subr.mxu0 0.0
    %346 = vmatpush1.xpose.msra.mxu0 0.0
    %347 = vmatprep.subr.mxu0 0.0
    %348 = vmatpush1.xpose.msra.mxu0 0.0
    %349 = vmatprep.subr.mxu0 0.0
    %350 = vmatpush1.xpose.msra.mxu0 0.0
    %351 = vmatprep.subr.mxu0 0.0
    %352 = vmatpush1.xpose.msra.mxu0 0.0
    %353 = vmatprep.subr.mxu0 0.0
    %354 = vmatpush1.xpose.msra.mxu0 0.0
    %355 = vmatprep.subr.mxu0 0.0
    %356 = vmatpush1.xpose.msra.mxu0 0.0
    %357 = vmatprep.subr.mxu0 0.0
    %358 = vmatpush1.xpose.msra.mxu0 0.0
    %359 = vmatprep.subr.mxu0 0.0
    %360 = vmatpush1.xpose.msra.mxu0 0.0
    %361 = vmatprep.subr.mxu0 0.0
    %362 = vmatpush1.xpose.msra.mxu0 0.0
    %363 = vmatprep.subr.mxu0 0.0
    %364 = vmatpush1.xpose.msra.mxu0 0.0
    %365 = vmatprep.subr.mxu0 0.0
    %366 = vmatpush1.xpose.msra.mxu0 0.0
    %367 = vmatprep.subr.mxu0 0.0
    %368 = vmatpush1.xpose.msra.mxu0 0.0
    %369 = vmatprep.subr.mxu0 0.0
    %370 = vmatpush1.xpose.msra.mxu0 0.0
    %371 = vmatprep.subr.mxu0 0.0
    %372 = vmatpush1.xpose.msra.mxu0 0.0
    %373 = vmatprep.subr.mxu0 0.0
    %374 = vmatpush1.xpose.msra.mxu0 0.0
    %375 = vmatprep.mubr.f32.mxu0 0.0
    %376 = vmatmul.mubr.f32.gmra.mrb[0].mxu0 %v306
    %v377 = vpop.f32.mrb[0].mxu0
    %v378 = vadd.f32 %v270, %v377
    %v379 = vpop.f32.mrb[0].mxu0
    %380 = vdwg.mxu0
    %v381 = vtanh.pop %v378
    %v382 = vld [vmem:[%s7] sm:$0x3]
    %vm383 = vnez %v382
    %v384 = vsel %vm383, 16843009, 0
    %v385 = vunpack.c.0.s8 %v384
    %vm386 = vcmp.ne.s32.totalorder %v385, 0
    %v387 = vsel %vm386, %v381, 0.0
    %vm388 = vcmask 64512
    %389 = vst.msk [vmem:[#allocation5] sm:$0xff] %vm388, %v387
    // Predicated region
    $region38: #{tpu_custom_call.1} parent=1 // pred_check
      _
    $region39: #{tpu_custom_call.1} parent=1 // pred_check_branch
      %391 = sbr.rel (0) target = $region41
    $region40: #{tpu_custom_call.1} parent=1 // pred_region
      %s393 = ssub.s32 128, 128
      %394 = vsyncadd [#allocation4], %s393
      %s396 = sshll.u32 [#allocation5], 4
      %s397 = int_to_ptr.vmem [resolvable:$true] %s396
      %399 = dma.vmem_to_hbm [thread:$0]  %s397, 128, %s8, [#allocation4]
    $region41: #{tpu_custom_call.1} parent=1 // pred_fallthru
      _
    // Predicated region
    $region42: #{tpu_custom_call.1} parent=1 // pred_check
      _
    $region43: #{tpu_custom_call.1} parent=1 // pred_check_branch
      %401 = sbr.rel (0) target = $region45
    $region44: #{tpu_custom_call.1} parent=1 // pred_region
      %402 = dma.done [#allocation4], 128
    $region45: #{tpu_custom_call.1} parent=1 // pred_fallthru
      _
    %403 = vsyncpa [#allocation3], 1
    %404 = vsyncpa [#allocation4], 1

</llo_original>
